<compile_context>
chip_gen: v7x
topology: tpu7x:2x2x1
jax: 0.10.0
libtpu: 0.0.40
codegen_flags: <defaults>
</compile_context>

<pallas_src>
import jax
import jax.numpy as jnp
from jax import lax
from jax.experimental import pallas as pl
from jax.experimental.pallas import tpu as pltpu


def embedding_gather_kernel(ids_ref, emb_hbm, pe_ref, out_ref, sem):
    # ids_ref: SMEM (B * S_pad,) int32  -- all token ids, row-major (b, pos)
    # emb_hbm: HBM  (V, D_pad)          -- embedding table, never copied wholesale
    # pe_ref : VMEM (tS, D_pad)         -- positional encoding for this seq tile
    # out_ref: VMEM (B, tS, D_pad)      -- output block: this seq tile, all batches
    # sem    : scalar DMA semaphore shared by every row copy of this step
    s = pl.program_id(0)
    B, tS, _ = out_ref.shape
    S_pad = pl.num_programs(0) * tS
    base = s * tS

    def row_copy(b, i):
        idx = ids_ref[b * S_pad + base + i]
        return pltpu.make_async_copy(
            emb_hbm.at[pl.ds(idx, 1), :],       # (1, D) table row in HBM
            out_ref.at[b, pl.ds(i, 1), :],      # (1, D) row of the output block
            sem,
        )

    # Issue every row-gather DMA for this block; they run concurrently on the
    # DMA engines while we keep issuing.
    def issue_batch(b, _):
        def issue_tok(i, _):
            row_copy(b, i).start()
            return 0
        lax.fori_loop(0, tS, issue_tok, 0)
        return 0

    lax.fori_loop(0, B, issue_batch, 0)

    # Drain: all copies have identical size, so wait with a same-shaped
    # descriptor once per issued copy (order does not matter).
    def drain(_, carry):
        pltpu.make_async_copy(
            emb_hbm.at[pl.ds(0, 1), :], out_ref.at[0, pl.ds(0, 1), :], sem
        ).wait()
        return carry

    lax.fori_loop(0, B * tS, drain, 0)

    # Fused positional-encoding add: one dense, lane-aligned (B, tS, D) slab.
    out_ref[...] = out_ref[...] + pe_ref[...]


def _round_up(x, m):
    return ((x + m - 1) // m) * m


def _pick_seq_tile(s_pad, batch, d_pad, itemsize, budget_bytes=8 * 1024 * 1024):
    """Largest multiple-of-8 divisor of s_pad whose pipelined blocks fit the budget."""
    best = 8
    for t in range(8, s_pad + 1, 8):
        if s_pad % t == 0 and 2 * (batch + 1) * t * d_pad * itemsize <= budget_bytes:
            best = t
    return best


def embedding_forward(tokens, emb_table, pe_table):
    """tokens: (B, S) int ids, emb_table: (V, D), pe_table: (max_len >= S, D)."""
    B, S = tokens.shape
    V, D = emb_table.shape
    out_dtype = emb_table.dtype
    itemsize = jnp.dtype(out_dtype).itemsize

    # Lane-dense last dim (multiple of 128) and sublane-friendly seq tile
    # (multiple of 8); padding is sliced off at the end.
    D_pad = _round_up(D, 128)
    S_pad = _round_up(S, 8)
    tS = _pick_seq_tile(S_pad, B, D_pad, itemsize)
    n_s = S_pad // tS

    emb_p = emb_table if D_pad == D else jnp.pad(emb_table, ((0, 0), (0, D_pad - D)))
    pe = pe_table[:S].astype(out_dtype)                     # pos_encoding(x.size(-1))
    pe_p = jnp.pad(pe, ((0, S_pad - S), (0, D_pad - D)))

    # Token ids: clamp into range (PyTorch would raise on OOB ids; a kernel
    # cannot, and an unclamped id would be an OOB HBM DMA), pad the seq axis
    # with id 0, flatten row-major for SMEM scalar prefetch.
    tok = jnp.clip(tokens.astype(jnp.int32), 0, V - 1)
    tok_p = jnp.pad(tok, ((0, 0), (0, S_pad - S)))
    ids_flat = tok_p.reshape(-1)                            # (B * S_pad,)

    grid_spec = pltpu.PrefetchScalarGridSpec(
        num_scalar_prefetch=1,                              # ids -> SMEM
        grid=(n_s,),
        in_specs=[
            pl.BlockSpec(memory_space=pl.ANY),              # table stays in HBM
            pl.BlockSpec((tS, D_pad), lambda s, ids: (s, 0)),      # PE tile
        ],
        out_specs=pl.BlockSpec((B, tS, D_pad), lambda s, ids: (0, s, 0)),
        scratch_shapes=[pltpu.SemaphoreType.DMA(())],
    )

    # VMEM footprint: double-buffered out + PE blocks (+ headroom); cap well
    # below v7x's 64 MiB per-TensorCore VMEM (table uses zero VMEM).
    blk_bytes = (B + 1) * tS * D_pad * itemsize
    vmem_limit = int(min(max(4 * blk_bytes, 16 * 1024 * 1024), 48 * 1024 * 1024))

    out = pl.pallas_call(
        embedding_gather_kernel,
        grid_spec=grid_spec,
        out_shape=jax.ShapeDtypeStruct((B, S_pad, D_pad), out_dtype),
        compiler_params=pltpu.CompilerParams(
            dimension_semantics=("parallel",),
            vmem_limit_bytes=vmem_limit,
        ),
    )(ids_flat, emb_p, pe_p)

    if S_pad != S or D_pad != D:
        out = out[:, :S, :D]
    return out


def sinusoidal_positional_encoding(max_len, d_model):
    """Standard transformer PE: pe[p, 2i]=sin(p/10000^(2i/D)), pe[p, 2i+1]=cos(...)."""
    pos = jnp.arange(max_len, dtype=jnp.float32)[:, None]
    i = jnp.arange(0, d_model, 2, dtype=jnp.float32)[None, :]
    angle = pos / jnp.power(10000.0, i / d_model)                 # (max_len, ceil(D/2))
    pe = jnp.zeros((max_len, d_model), jnp.float32)
    pe = pe.at[:, 0::2].set(jnp.sin(angle))
    pe = pe.at[:, 1::2].set(jnp.cos(angle[:, : d_model // 2]))    # guard for odd d_model
    return pe


if __name__ == "__main__":
    vocab_size, d_model, max_len = 64, 128, 16
    batch, seq = 2, 8
    padding_idx = 0

    key = jax.random.PRNGKey(0)
    k_emb, k_tok = jax.random.split(key)

    # nn.Embedding default init: N(0,1); padding_idx row is zeroed.
    emb_table = jax.random.normal(k_emb, (vocab_size, d_model), dtype=jnp.float32)
    emb_table = emb_table.at[padding_idx].set(0.0)

    pe_table = sinusoidal_positional_encoding(max_len, d_model)

    tokens = jax.random.randint(k_tok, (batch, seq), 0, vocab_size, dtype=jnp.int32)
    tokens = tokens.at[0, 0].set(padding_idx)   # exercise the padding row

    out = embedding_forward(tokens, emb_table, pe_table)
    out = jax.block_until_ready(out)

    # Pure-JAX reference check (row copies + f32 add are exact).
    ref = emb_table[tokens] + pe_table[:seq][None, :, :]
    assert out.shape == (batch, seq, d_model)
    assert jnp.allclose(out, ref, atol=1e-6, rtol=1e-6), "mismatch vs reference"

    print("KERNEL_OK")
</pallas_src>

<mosaic_0001>
module attributes {stable_mosaic.version = 11 : i64} {
  func.func @embedding_gather_kernel(%arg0: i32, %arg1: memref<16xi32, #tpu.memory_space<smem>>, %arg2: memref<64x128xf32, #tpu.memory_space<any>>, %arg3: memref<8x128xf32, #tpu.memory_space<vmem>>, %arg4: memref<2x8x128xf32, #tpu.memory_space<vmem>>, %arg5: memref<!tpu.dma_semaphore, #tpu.memory_space<semaphore_mem>>) attributes {dimension_semantics = [#tpu.dimension_semantics<parallel>], iteration_bounds = array<i64: 1>, scalar_prefetch = 1 : i64, scratch_operands = 1 : i64, tpu.core_type = #tpu.core_type<tc>, window_params = [{}, {transform_indices = @transform_1, window_bounds = array<i64: 8, 128>}, {transform_indices = @transform_2, window_bounds = array<i64: 2, 8, 128>}]} {
    %c8_i32 = arith.constant 8 : i32
    %0 = arith.muli %arg0, %c8_i32 : i32
    %c0_i32 = arith.constant 0 : i32
    %c2_i32 = arith.constant 2 : i32
    %1 = arith.addi %c0_i32, %c2_i32 : i32
    %c1_i32 = arith.constant 1 : i32
    scf.for %arg6 = %c0_i32 to %1 step %c1_i32  : i32 {
      %c0_i32_10 = arith.constant 0 : i32
      %c8_i32_11 = arith.constant 8 : i32
      %9 = arith.addi %c0_i32_10, %c8_i32_11 : i32
      %c1_i32_12 = arith.constant 1 : i32
      scf.for %arg7 = %c0_i32_10 to %9 step %c1_i32_12  : i32 {
        %c8_i32_14 = arith.constant 8 : i32
        %10 = arith.muli %arg6, %c8_i32_14 : i32
        %11 = arith.addi %10, %0 : i32
        %12 = arith.addi %11, %arg7 : i32
        %13 = arith.index_cast %12 : i32 to index
        %14 = memref.load %arg1[%13] : memref<16xi32, #tpu.memory_space<smem>>
        %c0_i32_15 = arith.constant 0 : i32
        %15 = tpu.memref_slice %arg2[%14, %c0_i32_15] : memref<64x128xf32, #tpu.memory_space<any>> -> memref<1x128xf32, #tpu.memory_space<any>>
        %c0_i32_16 = arith.constant 0 : i32
        %16 = tpu.memref_slice %arg4[%arg6, %arg7, %c0_i32_16] : memref<2x8x128xf32, #tpu.memory_space<vmem>> -> memref<1x1x128xf32, #tpu.memory_space<vmem>>
        %17 = tpu.memref_squeeze %16 : memref<1x1x128xf32, #tpu.memory_space<vmem>> -> memref<1x128xf32, #tpu.memory_space<vmem>>
        tpu.enqueue_dma source(%15 : memref<1x128xf32, #tpu.memory_space<any>>) target(%17 : memref<1x128xf32, #tpu.memory_space<vmem>>) target_semaphore(%arg5 : memref<!tpu.dma_semaphore, #tpu.memory_space<semaphore_mem>>)
      }
      %c8_i32_13 = arith.constant 8 : i32
    }
    %c2_i32_0 = arith.constant 2 : i32
    %c0_i32_1 = arith.constant 0 : i32
    %c16_i32 = arith.constant 16 : i32
    %2 = arith.addi %c0_i32_1, %c16_i32 : i32
    %c1_i32_2 = arith.constant 1 : i32
    scf.for %arg6 = %c0_i32_1 to %2 step %c1_i32_2  : i32 {
      %c0_i32_10 = arith.constant 0 : i32
      %c0_i32_11 = arith.constant 0 : i32
      %c0_i32_12 = arith.constant 0 : i32
      %9 = tpu.memref_slice %arg2[%c0_i32_11, %c0_i32_12] : memref<64x128xf32, #tpu.memory_space<any>> -> memref<1x128xf32, #tpu.memory_space<any>>
      %c0_i32_13 = arith.constant 0 : i32
      %c0_i32_14 = arith.constant 0 : i32
      %10 = tpu.memref_slice %arg4[%c0_i32_10, %c0_i32_13, %c0_i32_14] : memref<2x8x128xf32, #tpu.memory_space<vmem>> -> memref<1x1x128xf32, #tpu.memory_space<vmem>>
      %11 = tpu.memref_squeeze %10 : memref<1x1x128xf32, #tpu.memory_space<vmem>> -> memref<1x128xf32, #tpu.memory_space<vmem>>
      tpu.wait_dma2 semaphore(%arg5 : memref<!tpu.dma_semaphore, #tpu.memory_space<semaphore_mem>>) src(%9 : memref<1x128xf32, #tpu.memory_space<any>>) dst(%11 : memref<1x128xf32, #tpu.memory_space<vmem>>)
    }
    %c0 = arith.constant 0 : index
    %c0_3 = arith.constant 0 : index
    %c0_4 = arith.constant 0 : index
    %3 = vector.load %arg4[%c0, %c0_3, %c0_4] : memref<2x8x128xf32, #tpu.memory_space<vmem>>, vector<2x8x128xf32>
    %c0_5 = arith.constant 0 : index
    %c0_6 = arith.constant 0 : index
    %4 = vector.load %arg3[%c0_5, %c0_6] : memref<8x128xf32, #tpu.memory_space<vmem>>, vector<8x128xf32>
    %5 = vector.shape_cast %4 : vector<8x128xf32> to vector<1x8x128xf32>
    %6 = vector.broadcast %5 : vector<1x8x128xf32> to vector<2x8x128xf32>
    %7 = arith.addf %3, %6 : vector<2x8x128xf32>
    %c0_7 = arith.constant 0 : index
    %c0_8 = arith.constant 0 : index
    %c0_9 = arith.constant 0 : index
    %8 = vector.load %arg4[%c0_7, %c0_8, %c0_9] : memref<2x8x128xf32, #tpu.memory_space<vmem>>, vector<2x8x128xf32>
    tpu.vector_store %arg4[%c0_7, %c0_8, %c0_9], %7 {strides = array<i32>} : memref<2x8x128xf32, #tpu.memory_space<vmem>>, vector<2x8x128xf32>,
    return
  }
  func.func @transform_1(%arg0: i32, %arg1: memref<16xi32, #tpu.memory_space<smem>>) -> (i32, i32) {
    %c0_i32 = arith.constant 0 : i32
    %c0_i32_0 = arith.constant 0 : i32
    return %arg0, %c0_i32 : i32, i32
  }
  func.func @transform_2(%arg0: i32, %arg1: memref<16xi32, #tpu.memory_space<smem>>) -> (i32, i32, i32) {
    %c0_i32 = arith.constant 0 : i32
    %c0_i32_0 = arith.constant 0 : i32
    %c0_i32_1 = arith.constant 0 : i32
    return %c0_i32, %arg0, %c0_i32_0 : i32, i32, i32
  }
}

</mosaic_0001>

<llo_original>
// kernel: tpu_custom_call.1
$region0: #{tpu_custom_call.1}
  #allocation0 [shape = 'u32[]', space=smem, size = 0x4, offset = 0x4, fixed_abs, tag = 'smem constant byte address 0x4 - core index']
  #allocation1 [shape = 'u32[144,128]{1,0:T(1,128)}', space=vmem, size = 0x12000, scoped, tag = 'internal scratch']
  #allocation2 [shape = 's32[1]{0}', space=sflag, size = 0x4, scoped, tag = 'scratch operand']
  #allocation3 [shape = 's32[1]{0}', space=sflag, size = 0x4, scoped, tag = 'scoped memory for tpu_custom_call.1']
  #allocation4 [shape = 'u8[512]{0}', space=smem, size = 0x200, scoped, tag = 'prefetched SMEM operand 0']
  #allocation9 [shape = 's32[]', space=sflag, size = 0x4, offset = 0, fixed_abs, tag = 'sflag constant byte address 0x0 - dummy sync flag']
  #allocation10 [shape = 's32[]', space=sflag, size = 0x4, offset = 0, fixed_abs, tag = 'sflag constant byte address 0x0 - dummy sync flag']
  #allocation11 [shape = 'u32[]', space=smem, size = 0x4, offset = 0x44, fixed_abs, tag = 'smem constant byte address 0x44 - assertion arg 0']
  #allocation12 [shape = 'u32[]', space=smem, size = 0x4, offset = 0x48, fixed_abs, tag = 'smem constant byte address 0x48 - assertion arg 1']
  %s0 = inlined_call_operand.hbm [shape: s32[16], index: 0, kind: input, shape index: {}]
  %s1 = inlined_call_operand.hbm [shape: f32[64,128], index: 1, kind: input, shape index: {}]
  %s2 = inlined_call_operand.hbm [shape: f32[8,128], index: 2, kind: input, shape index: {}]
  %s3 = inlined_call_operand.hbm [shape: f32[2,8,128], index: 3, kind: output, shape index: {}]
  %s4 = sld [smem:[#allocation0]]
  $region43: #{tpu_custom_call.1} parent=0
    _
  %s6 = ssub.s32 1, %s4
  %s7 = scalar_select 0, %s6, %s4
  %9 = dma.hbm_to_smem %s0, 16, [#allocation4], [#allocation3]
  %10 = dma.done [#allocation3], 16
  %11 = sfence
  $region1: #{tpu_custom_call.1} parent=0
    #allocation5 [shape = 'u8[4096]{0}', space=vmem, size = 0x1000, scoped, tag = 'input window, operand 2, single buffered']
    #allocation6 [shape = 's32[1]{0}', space=sflag, size = 0x4, scoped, tag = 'scoped memory for tpu_custom_call.1']
    #allocation7 [shape = 's32[1]{0}', space=sflag, size = 0x4, scoped, tag = 'scoped memory for tpu_custom_call.1']
    #allocation8 [shape = 'u8[8192]{0}', space=vmem, size = 0x2000, scoped, tag = 'output window, operand 0, single buffered']
    %12 = vsyncpa [#allocation6], 0
    %13 = vsyncpa [#allocation7], 0
    // Predicated region
    $region2: #{tpu_custom_call.1} parent=1 // pred_check
      _
    $region3: #{tpu_custom_call.1} parent=1 // pred_check_branch
      %15 = sbr.rel (0) target = $region5
    $region4: #{tpu_custom_call.1} parent=1 // pred_region
      %s17 = ssub.s32 128, 128
      %18 = vsyncadd [#allocation6], %s17
      %s20 = sshll.u32 [#allocation5], 4
      %s21 = int_to_ptr.vmem [resolvable:$true] %s20
      %23 = dma.hbm_to_vmem [thread:$0]  %s2, 128, %s21, [#allocation6]
    $region5: #{tpu_custom_call.1} parent=1 // pred_fallthru
      _
    // Predicated region
    $region6: #{tpu_custom_call.1} parent=1 // pred_check
      _
    $region7: #{tpu_custom_call.1} parent=1 // pred_check_branch
      %25 = sbr.rel (0) target = $region9
    $region8: #{tpu_custom_call.1} parent=1 // pred_region
      %26 = dma.done [#allocation6], 128
    $region9: #{tpu_custom_call.1} parent=1 // pred_fallthru
      _
    %s27 = smul.u32 0, 8
    loop: start=0, step=1, limit=2
    $region10: #{tpu_custom_call.1} parent=1 // loop_pre_header
      _
    $region11: #{tpu_custom_call.1} parent=1 // loop_header
      %s29 = sphi 0, %s33
      %p30 = scmp.ge.s32.totalorder %s29, 2
    $region12: #{tpu_custom_call.1} parent=1 // loop_header_branch
      %32 = sbr.rel (%p30) target = $region16
    $region13: #{tpu_custom_call.1} parent=1 // loop_body
      loop: start=0, step=1, limit=8
      $region17: #{tpu_custom_call.1} parent=13 // loop_pre_header
        _
      $region18: #{tpu_custom_call.1} parent=13 // loop_header
        %s35 = sphi 0, %s39
        %p36 = scmp.ge.s32.totalorder %s35, 8
      $region19: #{tpu_custom_call.1} parent=13 // loop_header_branch
        %38 = sbr.rel (%p36) target = $region23
      $region20: #{tpu_custom_call.1} parent=13 // loop_body
        %s40 = smul.u32 %s29, 8
        %s41 = sadd.s32 %s40, %s27
        %s42 = sadd.s32 %s41, %s35
        %s43 = sld [smem:[#allocation4 + %s42]]
        %s44 = smul.addr %s43, 16
        %s45 = scalar_lea.hbm %s1, %s44
        %s46 = sadd.s32 %s35, %s40
        %s47 = scalar_lea.vmem [#allocation8], %s46
        // Predicated region
        $region24: #{tpu_custom_call.1} parent=20 // pred_check
          _
        $region25: #{tpu_custom_call.1} parent=20 // pred_check_branch
          %49 = sbr.rel target = $region27
        $region26: #{tpu_custom_call.1} parent=20 // pred_region
          %50 = sst [smem:[#allocation11]] [#allocation10]
          %51 = sst [smem:[#allocation12]] [#allocation9]
        $region27: #{tpu_custom_call.1} parent=20 // pred_fallthru
          _
        %53 = shalt.err (0)
        %s55 = sshll.u32 %s47, 4
        %s56 = int_to_ptr.vmem [resolvable:$true] %s55
        %58 = dma.hbm_to_vmem [thread:$0]  %s45, 16, %s56, [#allocation2]
      $region21: #{tpu_custom_call.1} parent=13 // loop_footer
        %s39 = sadd.s32 1, %s35
      $region22: #{tpu_custom_call.1} parent=13 // loop_footer_branch
        %34 = sbr.rel target = $region18
      $region23: #{tpu_custom_call.1} parent=13 // loop_exit
        _
    $region14: #{tpu_custom_call.1} parent=1 // loop_footer
      %s33 = sadd.s32 1, %s29
    $region15: #{tpu_custom_call.1} parent=1 // loop_footer_branch
      %28 = sbr.rel target = $region11
    $region16: #{tpu_custom_call.1} parent=1 // loop_exit
      _
    loop: start=0, step=1, limit=16
    $region28: #{tpu_custom_call.1} parent=1 // loop_pre_header
      _
    $region29: #{tpu_custom_call.1} parent=1 // loop_header
      %s60 = sphi 0, %s64
      %p61 = scmp.ge.s32.totalorder %s60, 16
    $region30: #{tpu_custom_call.1} parent=1 // loop_header_branch
      %63 = sbr.rel (%p61) target = $region34
    $region31: #{tpu_custom_call.1} parent=1 // loop_body
      %s65 = smul.u32 1, 1
      %s66 = sshll.u32 %s65, 4
      %67 = dma.done [#allocation2], %s66
    $region32: #{tpu_custom_call.1} parent=1 // loop_footer
      %s64 = sadd.s32 1, %s60
    $region33: #{tpu_custom_call.1} parent=1 // loop_footer_branch
      %59 = sbr.rel target = $region29
    $region34: #{tpu_custom_call.1} parent=1 // loop_exit
      _
    %v68 = vld [vmem:[#allocation8] sm:$0xff]
    %v69 = vld [vmem:[#allocation8 + $0x8] sm:$0xff]
    %v70 = vld [vmem:[#allocation5] sm:$0xff]
    %v71 = vadd.f32 %v68, %v70
    %v72 = vadd.f32 %v69, %v70
    %73 = vst [vmem:[#allocation8] sm:$0xff] %v71
    %74 = vst [vmem:[#allocation8 + $0x8] sm:$0xff] %v72
    // Predicated region
    $region35: #{tpu_custom_call.1} parent=1 // pred_check
      _
    $region36: #{tpu_custom_call.1} parent=1 // pred_check_branch
      %76 = sbr.rel (0) target = $region38
    $region37: #{tpu_custom_call.1} parent=1 // pred_region
      %s78 = ssub.s32 256, 256
      %79 = vsyncadd [#allocation7], %s78
      %s80 = sshll.u32 [#allocation8], 4
      %s81 = int_to_ptr.vmem [resolvable:$true] %s80
      %86 = dma.vmem_to_hbm [thread:$0]  %s81, 256, %s3, [#allocation7], 128, 128, 8
    $region38: #{tpu_custom_call.1} parent=1 // pred_fallthru
      _
    // Predicated region
    $region39: #{tpu_custom_call.1} parent=1 // pred_check
      _
    $region40: #{tpu_custom_call.1} parent=1 // pred_check_branch
      %88 = sbr.rel (0) target = $region42
    $region41: #{tpu_custom_call.1} parent=1 // pred_region
      %89 = dma.done [#allocation7], 256
    $region42: #{tpu_custom_call.1} parent=1 // pred_fallthru
      _
    %90 = vsyncpa [#allocation6], 1
    %91 = vsyncpa [#allocation7], 1
  %92 = vsyncmov [#allocation2]
  %s93 = vpop.sfrf %92
  %p94 = scmp.eq.s32.totalorder %s93, 0
  %p95 = pneg %p94
  %97 = shalt.err (%p95)

</llo_original>
